<compile_context>
chip_gen: v7x
topology: tpu7x:2x2x1
jax: 0.10.0
libtpu: 0.0.40
codegen_flags: <defaults>
</compile_context>

<pallas_src>
import math
from functools import partial

import jax
import jax.numpy as jnp
from jax import lax
from jax.experimental import pallas as pl
from jax.experimental.pallas import tpu as pltpu


_TARGET_BLOCK_BYTES = 4 * 1024 * 1024  # f32 bytes per block (x ~4 buffers ~= 16 MiB VMEM)


def _parabolic_kernel(x_ref, o_ref, *, row_len):
    s = x_ref[...].astype(jnp.float32)              # (TR, Lp)
    lane_axis = s.ndim - 1
    lp = s.shape[lane_axis]

    # 3-tap stencil neighbours via XLU lane rotations.  Wrap-around values only
    # land on columns whose in-row position is 0 or row_len-1, which are
    # forced to zero by the boundary mask below.
    s_left = pltpu.roll(s, shift=1, axis=lane_axis)          # s[i-1]
    s_right = pltpu.roll(s, shift=lp - 1, axis=lane_axis)    # s[i+1]

    # conv1d(s, [1,-2,1], pad=1) and conv1d(s, [-0.5,0,0.5], pad=1)
    a = s_left - 2.0 * s + s_right
    b = 0.5 * (s_right - s_left)

    # Boundary mask depends only on the column: compute it on one (1, Lp) row
    # and let broadcasting widen it across the sublane (row) dimension.
    col = lax.broadcasted_iota(jnp.int32, (1, lp), dimension=1)
    if row_len == lp:
        boundary = (col == 0) | (col == row_len - 1)
    else:
        pos = col % row_len                       # position inside an original row
        boundary = (pos == 0) | (pos == row_len - 1)
    mask = boundary | (jnp.abs(b) >= jnp.abs(a))

    # a == 0 implies |b| >= |a|, so any inf/NaN from the reciprocal is always
    # discarded by the elementwise select (matches the torch path).
    val = -b * pl.reciprocal(a, approx=False)
    o_ref[...] = jnp.where(mask, jnp.zeros_like(val), val).astype(o_ref.dtype)


def parabolic_interpolation_1d(x):
    """x: (B, C, L) -> (B, C, L) float32, matching ParabolicInterpolation1d.forward."""
    B, C, L = x.shape
    R = B * C

    # Lane-dense packing: fold k consecutive rows into one lane-row so the
    # block's last dim is a multiple of 128 (unmasked stores).  Pure reshape.
    k = 1
    if L % 128 != 0:
        base = 128 // math.gcd(L, 128)            # smallest k with (k * L) % 128 == 0
        if base > 1 and R % base == 0:
            k = base
    Rp, Lp = R // k, L * k
    x2d = x.reshape(Rp, Lp)                       # no pad, no dtype copy in HBM

    # Row tile: largest multiple-of-8 row count under the per-block VMEM target.
    target_rows = max(1, _TARGET_BLOCK_BYTES // (Lp * 4))
    if target_rows >= Rp or Rp <= 8:
        tr = Rp                                   # single block / full sublane dim
    else:
        tr = max(8, (target_rows // 8) * 8)
    grid = (pl.cdiv(Rp, tr),)                     # ragged last block handled by Pallas

    out2d = pl.pallas_call(
        partial(_parabolic_kernel, row_len=L),
        out_shape=jax.ShapeDtypeStruct((Rp, Lp), jnp.float32),
        grid_spec=pl.GridSpec(
            grid=grid,
            in_specs=[pl.BlockSpec((tr, Lp), lambda i: (i, 0))],
            out_specs=pl.BlockSpec((tr, Lp), lambda i: (i, 0)),
        ),
        compiler_params=pltpu.CompilerParams(
            dimension_semantics=("parallel",),
            vmem_limit_bytes=48 * 1024 * 1024,    # > scoped defaults, < v7x physical 64 MiB
        ),
    )(x2d)

    return out2d.reshape(B, C, L)


def _reference(x):
    """Pure-JAX reference mirroring the PyTorch forward (zero-padded conv1d)."""
    s = x.astype(jnp.float32)
    sp = jnp.pad(s, ((0, 0), (0, 0), (1, 1)))
    s_left, s_right = sp[..., :-2], sp[..., 2:]
    a = s_left - 2.0 * s + s_right
    b = 0.5 * (s_right - s_left)
    L = s.shape[-1]
    col = jnp.arange(L)
    mask = (col == 0) | (col == L - 1) | (jnp.abs(b) >= jnp.abs(a))
    return jnp.where(mask, 0.0, -b / a)


if __name__ == "__main__":
    key = jax.random.PRNGKey(0)
    x = jax.random.normal(key, (2, 4, 16), dtype=jnp.float32)

    out = parabolic_interpolation_1d(x)
    out = jax.block_until_ready(out)

    ref = _reference(x)
    assert out.shape == (2, 4, 16)
    assert jnp.allclose(out, ref, atol=1e-5, rtol=1e-5), "mismatch vs reference"

    print("KERNEL_OK")
</pallas_src>

<mosaic_0001>
module attributes {stable_mosaic.version = 11 : i64} {
  func.func @_parabolic_kernel(%arg0: i32, %arg1: memref<1x128xf32, #tpu.memory_space<vmem>>, %arg2: memref<1x128xf32, #tpu.memory_space<vmem>>) attributes {dimension_semantics = [#tpu.dimension_semantics<parallel>], iteration_bounds = array<i64: 1>, scalar_prefetch = 0 : i64, scratch_operands = 0 : i64, tpu.core_type = #tpu.core_type<tc>, window_params = [{transform_indices = @transform_0, window_bounds = array<i64: 1, 128>}, {transform_indices = @transform_1, window_bounds = array<i64: 1, 128>}]} {
    %c0 = arith.constant 0 : index
    %c0_0 = arith.constant 0 : index
    %0 = vector.load %arg1[%c0, %c0_0] : memref<1x128xf32, #tpu.memory_space<vmem>>, vector<1x128xf32>
    %c1_i32 = arith.constant 1 : i32
    %1 = tpu.dynamic_rotate %0 by %c1_i32 dim 1 : vector<1x128xf32>, i32 -> vector<1x128xf32>
    %c127_i32 = arith.constant 127 : i32
    %2 = tpu.dynamic_rotate %0 by %c127_i32 dim 1 : vector<1x128xf32>, i32 -> vector<1x128xf32>
    %cst = arith.constant 2.000000e+00 : f32
    %3 = vector.broadcast %cst : f32 to vector<1x128xf32>
    %4 = arith.mulf %3, %0 : vector<1x128xf32>
    %5 = arith.subf %1, %4 : vector<1x128xf32>
    %6 = arith.addf %5, %2 : vector<1x128xf32>
    %7 = arith.subf %2, %1 : vector<1x128xf32>
    %cst_1 = arith.constant 5.000000e-01 : f32
    %8 = vector.broadcast %cst_1 : f32 to vector<1x128xf32>
    %9 = arith.mulf %8, %7 : vector<1x128xf32>
    %10 = tpu.iota {dimensions = array<i32: 1>} : vector<1x128xi32>
    %c16_i32 = arith.constant 16 : i32
    %c0_i32 = arith.constant 0 : i32
    %11 = arith.cmpi eq, %c16_i32, %c0_i32 : i32
    %c1_i32_2 = arith.constant 1 : i32
    %12 = arith.select %11, %c1_i32_2, %c16_i32 : i32
    %13 = vector.broadcast %12 : i32 to vector<1x128xi32>
    %14 = arith.remsi %10, %13 : vector<1x128xi32>
    %c0_i32_3 = arith.constant 0 : i32
    %15 = vector.broadcast %c0_i32_3 : i32 to vector<1x128xi32>
    %16 = arith.cmpi ne, %14, %15 : vector<1x128xi32>
    %c0_i32_4 = arith.constant 0 : i32
    %17 = vector.broadcast %c0_i32_4 : i32 to vector<1x128xi32>
    %18 = arith.cmpi slt, %14, %17 : vector<1x128xi32>
    %c0_i32_5 = arith.constant 0 : i32
    %19 = arith.cmpi slt, %12, %c0_i32_5 : i32
    %20 = vector.broadcast %19 : i1 to vector<1x128xi1>
    %21 = vector.broadcast %20 : vector<1x128xi1> to vector<1x128xi1>
    %22 = arith.xori %18, %21 : vector<1x128xi1>
    %23 = arith.andi %22, %16 : vector<1x128xi1>
    %24 = vector.broadcast %12 : i32 to vector<1x128xi32>
    %25 = arith.addi %14, %24 : vector<1x128xi32>
    %26 = arith.select %23, %25, %14 : vector<1x128xi1>, vector<1x128xi32>
    %c0_i32_6 = arith.constant 0 : i32
    %27 = vector.broadcast %c0_i32_6 : i32 to vector<1x128xi32>
    %28 = arith.cmpi eq, %26, %27 : vector<1x128xi32>
    %c15_i32 = arith.constant 15 : i32
    %29 = vector.broadcast %c15_i32 : i32 to vector<1x128xi32>
    %30 = arith.cmpi eq, %26, %29 : vector<1x128xi32>
    %31 = arith.ori %28, %30 : vector<1x128xi1>
    %32 = math.absf %9 : vector<1x128xf32>
    %33 = math.absf %6 : vector<1x128xf32>
    %34 = arith.cmpf oge, %32, %33 : vector<1x128xf32>
    %35 = arith.ori %31, %34 : vector<1x128xi1>
    %cst_7 = arith.constant 0.000000e+00 : f32
    %36 = vector.broadcast %cst_7 : f32 to vector<1x128xf32>
    %37 = arith.subf %36, %9 : vector<1x128xf32>
    %38 = tpu.reciprocal %6 : vector<1x128xf32> -> vector<1x128xf32>
    %39 = arith.mulf %37, %38 : vector<1x128xf32>
    %cst_8 = arith.constant 0.000000e+00 : f32
    %40 = vector.broadcast %cst_8 : f32 to vector<1x128xf32>
    %41 = arith.select %35, %40, %39 : vector<1x128xi1>, vector<1x128xf32>
    %c0_9 = arith.constant 0 : index
    %c0_10 = arith.constant 0 : index
    %42 = vector.load %arg2[%c0_9, %c0_10] : memref<1x128xf32, #tpu.memory_space<vmem>>, vector<1x128xf32>
    tpu.vector_store %arg2[%c0_9, %c0_10], %41 {strides = array<i32>} : memref<1x128xf32, #tpu.memory_space<vmem>>, vector<1x128xf32>,
    return
  }
  func.func @transform_0(%arg0: i32) -> (i32, i32) {
    %c0_i32 = arith.constant 0 : i32
    %c0_i32_0 = arith.constant 0 : i32
    return %arg0, %c0_i32 : i32, i32
  }
  func.func @transform_1(%arg0: i32) -> (i32, i32) {
    %c0_i32 = arith.constant 0 : i32
    %c0_i32_0 = arith.constant 0 : i32
    return %arg0, %c0_i32 : i32, i32
  }
}

</mosaic_0001>

<llo_original>
// kernel: tpu_custom_call.1
$region0: #{tpu_custom_call.1}
  #allocation0 [shape = 'u32[]', space=smem, size = 0x4, offset = 0x4, fixed_abs, tag = 'smem constant byte address 0x4 - core index']
  #allocation1 [shape = 'u32[144,128]{1,0:T(1,128)}', space=vmem, size = 0x12000, scoped, tag = 'internal scratch']
  %s0 = inlined_call_operand.hbm [shape: f32[1,128], index: 0, kind: input, shape index: {}]
  %s1 = inlined_call_operand.hbm [shape: f32[1,128], index: 1, kind: output, shape index: {}]
  %s2 = sld [smem:[#allocation0]]
  $region18: #{tpu_custom_call.1} parent=0
    _
  %s4 = ssub.s32 1, %s2
  %s5 = scalar_select 0, %s4, %s2
  $region1: #{tpu_custom_call.1} parent=0
    #allocation2 [shape = 'u8[512]{0}', space=vmem, size = 0x400, scoped, tag = 'input window, operand 0, single buffered']
    #allocation3 [shape = 's32[1]{0}', space=sflag, size = 0x4, scoped, tag = 'scoped memory for tpu_custom_call.1']
    #allocation4 [shape = 's32[1]{0}', space=sflag, size = 0x4, scoped, tag = 'scoped memory for tpu_custom_call.1']
    #allocation5 [shape = 'u8[512]{0}', space=vmem, size = 0x400, scoped, tag = 'output window, operand 0, single buffered']
    %6 = vsyncpa [#allocation3], 0
    %7 = vsyncpa [#allocation4], 0
    // Predicated region
    $region2: #{tpu_custom_call.1} parent=1 // pred_check
      _
    $region3: #{tpu_custom_call.1} parent=1 // pred_check_branch
      %9 = sbr.rel (0) target = $region5
    $region4: #{tpu_custom_call.1} parent=1 // pred_region
      %s11 = ssub.s32 16, 16
      %12 = vsyncadd [#allocation3], %s11
      %s14 = sshll.u32 [#allocation2], 4
      %s15 = int_to_ptr.vmem [resolvable:$true] %s14
      %17 = dma.hbm_to_vmem [thread:$0]  %s0, 16, %s15, [#allocation3]
    $region5: #{tpu_custom_call.1} parent=1 // pred_fallthru
      _
    // Predicated region
    $region6: #{tpu_custom_call.1} parent=1 // pred_check
      _
    $region7: #{tpu_custom_call.1} parent=1 // pred_check_branch
      %19 = sbr.rel (0) target = $region9
    $region8: #{tpu_custom_call.1} parent=1 // pred_region
      %20 = dma.done [#allocation3], 16
    $region9: #{tpu_custom_call.1} parent=1 // pred_fallthru
      _
    %v21 = vld [vmem:[#allocation2] sm:$0x1]
    %22 = vrot.lane.b32.xlu0 %v21, 1
    %v23 = vpop.permute.xlu0 %22
    %24 = vrot.lane.b32.xlu0 %v21, 127
    %v25 = vpop.permute.xlu0 %24
    %v26 = vmul.f32 %v21, 2.0
    %v27 = vsub.f32 %v23, %v26
    %v28 = vadd.f32 %v27, %v25
    %v29 = vsub.f32 %v25, %v23
    %v30 = vmul.f32 %v29, 0.5
    %v31 = vlaneseq
    %v32 = vand.u32 %v31, 127
    %vm33 = vcmp.lt.s32.totalorder %v32, 0
    %v34 = vsub.s32 0, %v32
    %v35 = vsel %vm33, %v34, %v32
    %v36 = vshrl.u32 %v35, 4
    %v37 = vand.u32 %v35, 15
    %v38 = vsub.s32 0, %v37
    %v39 = vsel %vm33, %v38, %v37
    %vm40 = vcmp.ne.s32.totalorder %v39, 0
    %vm41 = vcmp.lt.s32.totalorder %v39, 0
    %vm42 = vmand %vm41, %vm40
    %v43 = vadd.s32 %v39, 16
    %v44 = vsel %vm42, %v43, %v39
    %vm45 = vcmp.eq.s32.totalorder %v44, 0
    %vm46 = vcmp.eq.s32.totalorder %v44, 15
    %vm47 = vmor %vm45, %vm46
    %v48 = vand.u32 2147483647, %v30
    %v49 = vand.u32 2147483647, %v28
    %vm50 = vcmp.ge.f32.partialorder %v48, %v49
    %vm51 = vmor %vm47, %vm50
    %v52 = vsub.f32 0.0, %v30
    %v53 = vrcp.pop %v28
    %v54 = vmul.f32 %v52, %v53
    %v55 = vsel %vm51, 0.0, %v54
    %56 = vst [vmem:[#allocation5] sm:$0x1] %v55
    // Predicated region
    $region10: #{tpu_custom_call.1} parent=1 // pred_check
      _
    $region11: #{tpu_custom_call.1} parent=1 // pred_check_branch
      %58 = sbr.rel (0) target = $region13
    $region12: #{tpu_custom_call.1} parent=1 // pred_region
      %s60 = ssub.s32 16, 16
      %61 = vsyncadd [#allocation4], %s60
      %s63 = sshll.u32 [#allocation5], 4
      %s64 = int_to_ptr.vmem [resolvable:$true] %s63
      %66 = dma.vmem_to_hbm [thread:$0]  %s64, 16, %s1, [#allocation4]
    $region13: #{tpu_custom_call.1} parent=1 // pred_fallthru
      _
    // Predicated region
    $region14: #{tpu_custom_call.1} parent=1 // pred_check
      _
    $region15: #{tpu_custom_call.1} parent=1 // pred_check_branch
      %68 = sbr.rel (0) target = $region17
    $region16: #{tpu_custom_call.1} parent=1 // pred_region
      %69 = dma.done [#allocation4], 16
    $region17: #{tpu_custom_call.1} parent=1 // pred_fallthru
      _
    %70 = vsyncpa [#allocation3], 1
    %71 = vsyncpa [#allocation4], 1

</llo_original>
